<compile_context>
chip_gen: v6e
topology: v6e:2x2x1
jax: 0.10.0
libtpu: 0.0.40
codegen_flags: <defaults>
</compile_context>

<pallas_src>
import functools
import math

import jax
import jax.numpy as jnp
from jax.experimental import pallas as pl
from jax.experimental.pallas import tpu as pltpu

HIDDEN = 64        # module's hidden width
HIDDEN_PAD = 128   # lane-padded hidden width
LANE = 128


# ----------------------------- Pallas kernel -------------------------------
def mlp_kernel(x_ref, w1_ref, b1_ref, w2_ref, b2_ref, out_ref):
    # Cast x f32 -> bf16 in-kernel (no extra wrapper HBM pass over x).
    xb = x_ref[...].astype(jnp.bfloat16)

    # Layer 1: Linear + ReLU.  bf16 operands, f32 MXU accumulation.
    h = jnp.dot(xb, w1_ref[...], preferred_element_type=jnp.float32)
    h = jnp.maximum(h + b1_ref[...], 0.0)

    # Layer 2: Linear (lane-padded output), bf16 writeback.
    out = jnp.dot(h.astype(jnp.bfloat16), w2_ref[...],
                  preferred_element_type=jnp.float32)
    out_ref[...] = (out + b2_ref[...]).astype(out_ref.dtype)


# ------------------------------ wrapper -------------------------------------
@functools.partial(jax.jit, static_argnames=("num_classes", "tb", "unpad"))
def tumor_classifier_forward(x, params, *, num_classes, tb=1024, unpad=True):
    w1, b1, w2, b2 = params          # w1:(in,128) bf16, b1:(1,128) f32,
    batch, in_dim = x.shape          # w2:(128,N_pad) bf16, b2:(1,N_pad) f32
    n_pad = w2.shape[1]

    # Effective batch tile: multiple of 16 (bf16 sublane packing), capped by
    # the (rounded) batch so small batches use a single step, large batches
    # keep >=2 grid steps (v7x megacore) and stream through the pipeline.
    tb_eff = min(tb, ((batch + 15) // 16) * 16)
    tb_eff = max(16, (tb_eff // 16) * 16)
    batch_p = ((batch + tb_eff - 1) // tb_eff) * tb_eff
    if batch_p != batch:
        x = jnp.pad(x, ((0, batch_p - batch), (0, 0)))

    grid = (batch_p // tb_eff,)
    out = pl.pallas_call(
        mlp_kernel,
        out_shape=jax.ShapeDtypeStruct((batch_p, n_pad), jnp.bfloat16),
        grid_spec=pltpu.PrefetchScalarGridSpec(
            num_scalar_prefetch=0,
            grid=grid,
            in_specs=[
                pl.BlockSpec((tb_eff, in_dim), lambda i: (i, 0)),  # x tile (f32)
                pl.BlockSpec(w1.shape, lambda i: (0, 0)),          # VMEM-resident
                pl.BlockSpec(b1.shape, lambda i: (0, 0)),
                pl.BlockSpec(w2.shape, lambda i: (0, 0)),
                pl.BlockSpec(b2.shape, lambda i: (0, 0)),
            ],
            out_specs=pl.BlockSpec((tb_eff, n_pad), lambda i: (i, 0)),
        ),
        compiler_params=pltpu.CompilerParams(
            dimension_semantics=("parallel",)),
    )(x, w1, b1, w2, b2)

    if unpad:
        # API-parity path: (batch, num_classes).  For mem-bound production
        # use unpad=False and let the consumer read the padded bf16 slab.
        return out[:batch, :num_classes]
    return out


# --------------------------- parameter setup (glue) ------------------------
def _init_linear(key, in_features, out_features):
    # PyTorch nn.Linear default init: U(-1/sqrt(in), 1/sqrt(in)) for W and b.
    kw, kb = jax.random.split(key)
    bound = 1.0 / math.sqrt(in_features)
    w = jax.random.uniform(kw, (out_features, in_features), jnp.float32,
                           -bound, bound)
    b = jax.random.uniform(kb, (out_features,), jnp.float32, -bound, bound)
    return w, b


def init_params(key, in_dim, num_classes):
    k1, k2 = jax.random.split(key)
    w1, b1 = _init_linear(k1, in_dim, HIDDEN)          # (64, in), (64,)
    w2, b2 = _init_linear(k2, HIDDEN, num_classes)     # (C, 64), (C,)

    n_pad = ((num_classes + LANE - 1) // LANE) * LANE

    # Transpose to [in, out] and zero-pad the lane (output) dimension.
    w1t = jnp.zeros((in_dim, HIDDEN_PAD), jnp.float32).at[:, :HIDDEN].set(w1.T)
    b1p = jnp.zeros((1, HIDDEN_PAD), jnp.float32).at[:, :HIDDEN].set(b1)
    w2t = jnp.zeros((HIDDEN_PAD, n_pad), jnp.float32).at[:HIDDEN, :num_classes].set(w2.T)
    b2p = jnp.zeros((1, n_pad), jnp.float32).at[:, :num_classes].set(b2)

    # bf16 weights (f32 accumulation in-kernel); f32 biases.
    return (w1t.astype(jnp.bfloat16), b1p,
            w2t.astype(jnp.bfloat16), b2p)


# ------------------------------ references ----------------------------------
def reference_bf16(x, params, num_classes):
    # Mirrors the kernel's numerics (bf16 operands, f32 accum, bf16 store).
    w1, b1, w2, b2 = params
    xb = x.astype(jnp.bfloat16)
    h = jnp.maximum(
        jnp.dot(xb, w1, preferred_element_type=jnp.float32) + b1, 0.0)
    out = jnp.dot(h.astype(jnp.bfloat16), w2,
                  preferred_element_type=jnp.float32) + b2
    return out.astype(jnp.bfloat16)[:, :num_classes]


def reference_f32(x, params, num_classes):
    # Pure-f32 forward (parity with the original PyTorch module numerics).
    w1, b1, w2, b2 = params
    h = jnp.maximum(jnp.dot(x, w1.astype(jnp.float32)) + b1, 0.0)
    out = jnp.dot(h, w2.astype(jnp.float32)) + b2
    return out[:, :num_classes]


# --------------------------------- main -------------------------------------
if __name__ == "__main__":
    key = jax.random.PRNGKey(0)
    k_params, k_x = jax.random.split(key)

    batch = 16
    in_dim = 32
    num_classes = 3

    params = init_params(k_params, in_dim, num_classes)
    x = jax.random.normal(k_x, (batch, in_dim), dtype=jnp.float32)

    out = tumor_classifier_forward(x, params, num_classes=num_classes)
    jax.block_until_ready(out)

    assert out.shape == (batch, num_classes), out.shape

    # Exact-numerics check against a bf16-mirroring reference.
    ref_b = reference_bf16(x, params, num_classes)
    assert jnp.allclose(out.astype(jnp.float32), ref_b.astype(jnp.float32),
                        atol=1e-2, rtol=1e-2), (
        float(jnp.max(jnp.abs(out.astype(jnp.float32)
                              - ref_b.astype(jnp.float32)))))

    # Loose parity check against the pure-f32 module forward.
    ref_f = reference_f32(x, params, num_classes)
    assert jnp.allclose(out.astype(jnp.float32), ref_f, atol=1e-1, rtol=5e-2), (
        float(jnp.max(jnp.abs(out.astype(jnp.float32) - ref_f))))

    print("KERNEL_OK")
</pallas_src>

<mosaic_0001>
module attributes {stable_mosaic.version = 11 : i64} {
  func.func @mlp_kernel(%arg0: i32, %arg1: memref<16x32xf32, #tpu.memory_space<vmem>>, %arg2: memref<32x128xbf16, #tpu.memory_space<vmem>>, %arg3: memref<1x128xf32, #tpu.memory_space<vmem>>, %arg4: memref<128x128xbf16, #tpu.memory_space<vmem>>, %arg5: memref<1x128xf32, #tpu.memory_space<vmem>>, %arg6: memref<16x128xbf16, #tpu.memory_space<vmem>>) attributes {dimension_semantics = [#tpu.dimension_semantics<parallel>], iteration_bounds = array<i64: 1>, scalar_prefetch = 0 : i64, scratch_operands = 0 : i64, tpu.core_type = #tpu.core_type<tc>, window_params = [{transform_indices = @transform_0, window_bounds = array<i64: 16, 32>}, {pipeline_mode = #tpu.pipeline_mode<synchronous>, transform_indices = @transform_1, window_bounds = array<i64: 32, 128>}, {pipeline_mode = #tpu.pipeline_mode<synchronous>, transform_indices = @transform_2, window_bounds = array<i64: 1, 128>}, {pipeline_mode = #tpu.pipeline_mode<synchronous>, transform_indices = @transform_3, window_bounds = array<i64: 128, 128>}, {pipeline_mode = #tpu.pipeline_mode<synchronous>, transform_indices = @transform_4, window_bounds = array<i64: 1, 128>}, {transform_indices = @transform_5, window_bounds = array<i64: 16, 128>}]} {
    %c0 = arith.constant 0 : index
    %c0_0 = arith.constant 0 : index
    %0 = vector.load %arg1[%c0, %c0_0] : memref<16x32xf32, #tpu.memory_space<vmem>>, vector<16x32xf32>
    %1 = arith.truncf %0 : vector<16x32xf32> to vector<16x32xbf16>
    %c0_1 = arith.constant 0 : index
    %c0_2 = arith.constant 0 : index
    %2 = vector.load %arg2[%c0_1, %c0_2] : memref<32x128xbf16, #tpu.memory_space<vmem>>, vector<32x128xbf16>
    %cst = arith.constant dense<0.000000e+00> : vector<16x128xf32>
    %3 = tpu.matmul %1, %2, %cst {dimension_numbers = #tpu.dot_dimension_numbers<[1], [0], [0], [1], [0, 0, 1, 1], [], []>} : vector<16x32xbf16>, vector<32x128xbf16>, vector<16x128xf32> -> vector<16x128xf32>
    %c0_3 = arith.constant 0 : index
    %c0_4 = arith.constant 0 : index
    %4 = vector.load %arg3[%c0_3, %c0_4] : memref<1x128xf32, #tpu.memory_space<vmem>>, vector<1x128xf32>
    %5 = vector.broadcast %4 : vector<1x128xf32> to vector<16x128xf32>
    %6 = arith.addf %3, %5 : vector<16x128xf32>
    %cst_5 = arith.constant 0.000000e+00 : f32
    %7 = vector.broadcast %cst_5 : f32 to vector<16x128xf32>
    %8 = arith.maximumf %6, %7 : vector<16x128xf32>
    %9 = arith.truncf %8 : vector<16x128xf32> to vector<16x128xbf16>
    %c0_6 = arith.constant 0 : index
    %c0_7 = arith.constant 0 : index
    %10 = vector.load %arg4[%c0_6, %c0_7] : memref<128x128xbf16, #tpu.memory_space<vmem>>, vector<128x128xbf16>
    %cst_8 = arith.constant dense<0.000000e+00> : vector<16x128xf32>
    %11 = tpu.matmul %9, %10, %cst_8 {dimension_numbers = #tpu.dot_dimension_numbers<[1], [0], [0], [1], [0, 0, 1, 1], [], []>} : vector<16x128xbf16>, vector<128x128xbf16>, vector<16x128xf32> -> vector<16x128xf32>
    %c0_9 = arith.constant 0 : index
    %c0_10 = arith.constant 0 : index
    %12 = vector.load %arg5[%c0_9, %c0_10] : memref<1x128xf32, #tpu.memory_space<vmem>>, vector<1x128xf32>
    %13 = vector.broadcast %12 : vector<1x128xf32> to vector<16x128xf32>
    %14 = arith.addf %11, %13 : vector<16x128xf32>
    %15 = arith.truncf %14 : vector<16x128xf32> to vector<16x128xbf16>
    %c0_11 = arith.constant 0 : index
    %c0_12 = arith.constant 0 : index
    %16 = vector.load %arg6[%c0_11, %c0_12] : memref<16x128xbf16, #tpu.memory_space<vmem>>, vector<16x128xbf16>
    tpu.vector_store %arg6[%c0_11, %c0_12], %15 {strides = array<i32>} : memref<16x128xbf16, #tpu.memory_space<vmem>>, vector<16x128xbf16>,
    return
  }
  func.func @transform_0(%arg0: i32) -> (i32, i32) {
    %c0_i32 = arith.constant 0 : i32
    %c0_i32_0 = arith.constant 0 : i32
    return %arg0, %c0_i32 : i32, i32
  }
  func.func @transform_1(%arg0: i32) -> (i32, i32) {
    %c0_i32 = arith.constant 0 : i32
    %c0_i32_0 = arith.constant 0 : i32
    %c0_i32_1 = arith.constant 0 : i32
    return %c0_i32, %c0_i32_0 : i32, i32
  }
  func.func @transform_2(%arg0: i32) -> (i32, i32) {
    %c0_i32 = arith.constant 0 : i32
    %c0_i32_0 = arith.constant 0 : i32
    %c0_i32_1 = arith.constant 0 : i32
    return %c0_i32, %c0_i32_0 : i32, i32
  }
  func.func @transform_3(%arg0: i32) -> (i32, i32) {
    %c0_i32 = arith.constant 0 : i32
    %c0_i32_0 = arith.constant 0 : i32
    %c0_i32_1 = arith.constant 0 : i32
    return %c0_i32, %c0_i32_0 : i32, i32
  }
  func.func @transform_4(%arg0: i32) -> (i32, i32) {
    %c0_i32 = arith.constant 0 : i32
    %c0_i32_0 = arith.constant 0 : i32
    %c0_i32_1 = arith.constant 0 : i32
    return %c0_i32, %c0_i32_0 : i32, i32
  }
  func.func @transform_5(%arg0: i32) -> (i32, i32) {
    %c0_i32 = arith.constant 0 : i32
    %c0_i32_0 = arith.constant 0 : i32
    return %arg0, %c0_i32 : i32, i32
  }
}

</mosaic_0001>

<llo_original>
// kernel: tumor_classifier_forward.1
$region0: #{tumor_classifier_forward.1}
  #allocation0 [shape = 'u32[]', space=smem, size = 0x4, offset = 0x4, fixed_abs, tag = 'smem constant byte address 0x4 - core index']
  #allocation1 [shape = 'u32[144,128]{1,0:T(1,128)}', space=vmem, size = 0x12000, scoped, tag = 'internal scratch']
  %s0 = inlined_call_operand.hbm [shape: f32[16,32], index: 0, kind: input, shape index: {}]
  %s1 = inlined_call_operand.hbm [shape: bf16[32,128], index: 1, kind: input, shape index: {}]
  %s2 = inlined_call_operand.vmem [shape: f32[1,128], index: 2, kind: input, shape index: {}]
  %s3 = inlined_call_operand.hbm [shape: bf16[128,128], index: 3, kind: input, shape index: {}]
  %s4 = inlined_call_operand.vmem [shape: f32[1,128], index: 4, kind: input, shape index: {}]
  %s5 = inlined_call_operand.vmem [shape: bf16[16,128], index: 5, kind: output, shape index: {}]
  %s6 = sld [smem:[#allocation0]]
  $region42: #{tumor_classifier_forward.1} parent=0
    _
  %s8 = ssub.s32 1, %s6
  %s9 = scalar_select 0, %s8, %s6
  $region1: #{tumor_classifier_forward.1} parent=0
    #allocation2 [shape = 'u8[8192]{0}', space=vmem, size = 0x2000, scoped, tag = 'input window, operand 0, single buffered']
    #allocation3 [shape = 's32[1]{0}', space=sflag, size = 0x4, scoped, tag = 'scoped memory for tumor_classifier_forward.1']
    #allocation4 [shape = 'u8[8192]{0}', space=vmem, size = 0x2000, scoped, tag = 'input window, operand 1, single buffered']
    #allocation5 [shape = 's32[1]{0}', space=sflag, size = 0x4, scoped, tag = 'scoped memory for tumor_classifier_forward.1']
    #allocation6 [shape = 'u8[32768]{0}', space=vmem, size = 0x8000, scoped, tag = 'input window, operand 3, single buffered']
    %10 = vsyncpa [#allocation3], 0
    %11 = vsyncpa [#allocation5], 0
    // Predicated region
    $region2: #{tumor_classifier_forward.1} parent=1 // pred_check
      _
    $region3: #{tumor_classifier_forward.1} parent=1 // pred_check_branch
      %13 = sbr.rel (0) target = $region5
    $region4: #{tumor_classifier_forward.1} parent=1 // pred_region
      %s15 = ssub.s32 256, 256
      %16 = vsyncadd [#allocation3], %s15
      %s17 = sshll.u32 [#allocation2], 4
      %s18 = int_to_ptr.vmem [resolvable:$true] %s17
      %23 = dma.hbm_to_vmem [thread:$0]  %s0, 256, %s18, [#allocation3], 128, 128, 8
    $region5: #{tumor_classifier_forward.1} parent=1 // pred_fallthru
      _
    // Predicated region
    $region6: #{tumor_classifier_forward.1} parent=1 // pred_check
      _
    $region7: #{tumor_classifier_forward.1} parent=1 // pred_check_branch
      %25 = sbr.rel (0) target = $region9
    $region8: #{tumor_classifier_forward.1} parent=1 // pred_region
      %s27 = ssub.s32 256, 256
      %28 = vsyncadd [#allocation5], %s27
      %s29 = sshll.u32 [#allocation4], 4
      %s30 = int_to_ptr.vmem [resolvable:$true] %s29
      %35 = dma.hbm_to_vmem [thread:$0]  %s1, 256, %s30, [#allocation5], 64, 64, 4
    $region9: #{tumor_classifier_forward.1} parent=1 // pred_fallthru
      _
    // Predicated region
    $region10: #{tumor_classifier_forward.1} parent=1 // pred_check
      _
    $region11: #{tumor_classifier_forward.1} parent=1 // pred_check_branch
      %37 = sbr.rel (0) target = $region13
    $region12: #{tumor_classifier_forward.1} parent=1 // pred_region
      _
    $region13: #{tumor_classifier_forward.1} parent=1 // pred_fallthru
      _
    // Predicated region
    $region14: #{tumor_classifier_forward.1} parent=1 // pred_check
      _
    $region15: #{tumor_classifier_forward.1} parent=1 // pred_check_branch
      %39 = sbr.rel (0) target = $region17
    $region16: #{tumor_classifier_forward.1} parent=1 // pred_region
      %s41 = ssub.s32 1024, 1024
      %42 = vsyncadd [#allocation5], %s41
      %s43 = sshll.u32 [#allocation6], 4
      %s44 = int_to_ptr.vmem [resolvable:$true] %s43
      %49 = dma.hbm_to_vmem [thread:$0]  %s3, 1024, %s44, [#allocation5], 64, 64, 4
    $region17: #{tumor_classifier_forward.1} parent=1 // pred_fallthru
      _
    // Predicated region
    $region18: #{tumor_classifier_forward.1} parent=1 // pred_check
      _
    $region19: #{tumor_classifier_forward.1} parent=1 // pred_check_branch
      %51 = sbr.rel (0) target = $region21
    $region20: #{tumor_classifier_forward.1} parent=1 // pred_region
      _
    $region21: #{tumor_classifier_forward.1} parent=1 // pred_fallthru
      _
    // Predicated region
    $region22: #{tumor_classifier_forward.1} parent=1 // pred_check
      _
    $region23: #{tumor_classifier_forward.1} parent=1 // pred_check_branch
      %53 = sbr.rel (0) target = $region25
    $region24: #{tumor_classifier_forward.1} parent=1 // pred_region
      %54 = dma.done [#allocation3], 256
    $region25: #{tumor_classifier_forward.1} parent=1 // pred_fallthru
      _
    // Predicated region
    $region26: #{tumor_classifier_forward.1} parent=1 // pred_check
      _
    $region27: #{tumor_classifier_forward.1} parent=1 // pred_check_branch
      %56 = sbr.rel (0) target = $region29
    $region28: #{tumor_classifier_forward.1} parent=1 // pred_region
      %57 = dma.done [#allocation5], 256
    $region29: #{tumor_classifier_forward.1} parent=1 // pred_fallthru
      _
    // Predicated region
    $region30: #{tumor_classifier_forward.1} parent=1 // pred_check
      _
    $region31: #{tumor_classifier_forward.1} parent=1 // pred_check_branch
      %59 = sbr.rel (0) target = $region33
    $region32: #{tumor_classifier_forward.1} parent=1 // pred_region
      %60 = dma.done [#allocation5], 1024
    $region33: #{tumor_classifier_forward.1} parent=1 // pred_fallthru
      _
    %v62 = vld [vmem:[#allocation2] sm:$0xff]
    %v63 = vld [vmem:[#allocation2 + $0x8] sm:$0xff]
    %v64 = vpack.c.bf16 %v63, %v62
    %v65 = vld [vmem:[#allocation4] sm:$0xf]
    %v66 = vld [vmem:[#allocation4 + $0x4] sm:$0xf]
    %v67 = vld [vmem:[#allocation4 + $0x8] sm:$0xf]
    %v68 = vld [vmem:[#allocation4 + $0xc] sm:$0xf]
    %v69 = vld [vmem:[%s2] sm:$0x1]
    %v71 = vlaneseq
    %v72 = vshrl.u32 %v71, 7
    %v73 = vsub.s32 0, %v72
    %v74 = vrot.slane %v69, %v73
    %v80 = vunpack.c.l.b16 %v65
    %v81 = vunpack.c.l.b16 %v66
    %v82 = vunpack.c.l.b16 %v67
    %v83 = vunpack.c.l.b16 %v68
    %v84 = vpack.c.b16 %v81, %v80
    %v85 = vpack.c.b16 %v83, %v82
    %vm88 = vcmask 261120
    %v90 = vsel %vm88, %v64, 0
    %92 = vmatprep.subr.bf16.mxu0 0
    %93 = vmatpush1.bf16.msra.mxu0 0
    %94 = vmatprep.subr.bf16.mxu0 0
    %95 = vmatpush1.bf16.msra.mxu0 0
    %96 = vmatprep.subr.bf16.mxu0 0
    %97 = vmatpush1.bf16.msra.mxu0 0
    %98 = vmatprep.subr.bf16.mxu0 0
    %99 = vmatpush1.bf16.msra.mxu0 0
    %100 = vmatprep.subr.bf16.mxu0 0
    %101 = vmatpush1.bf16.msra.mxu0 0
    %102 = vmatprep.subr.bf16.mxu0 0
    %103 = vmatpush1.bf16.msra.mxu0 0
    %104 = vmatprep.subr.bf16.mxu0 0
    %105 = vmatpush1.bf16.msra.mxu0 %v85
    %106 = vmatprep.subr.bf16.mxu0 0
    %107 = vmatpush1.bf16.msra.mxu0 %v84
    %108 = vmatprep.subr.bf16.mxu0 0
    %109 = vmatpush2.bf16.msra.mxu0 0
    %110 = vmatprep.subr.bf16.mxu0 0
    %111 = vmatpush2.bf16.msra.mxu0 0
    %112 = vmatprep.subr.bf16.mxu0 0
    %113 = vmatpush2.bf16.msra.mxu0 0
    %114 = vmatprep.subr.bf16.mxu0 0
    %115 = vmatpush2.bf16.msra.mxu0 0
    %116 = vmatprep.subr.bf16.mxu0 0
    %117 = vmatpush2.bf16.msra.mxu0 0
    %118 = vmatprep.subr.bf16.mxu0 0
    %119 = vmatpush2.bf16.msra.mxu0 0
    %120 = vmatprep.subr.bf16.mxu0 0
    %121 = vmatpush2.bf16.msra.mxu0 0
    %122 = vmatprep.subr.bf16.mxu0 0
    %123 = vmatpush2.bf16.msra.mxu0 0
    %124 = vmatprep.mubr.bf16.mxu0 0
    %125 = vmatmul.mubr.bf16.gmra.mxu0 %v90
    %v126 = vpop.f32.mrf.mxu0
    %v127 = vadd.f32 %v74, %v126
    %v128 = vpop.f32.mrf.mxu0
    %v129 = vpop.f32.mrf.mxu0
    %v130 = vadd.f32 %v74, %v129
    %v131 = vpop.f32.mrf.mxu0
    %132 = vdwg.mxu0
    %v133 = vmax.f32 %v127, 0.0
    %v134 = vmax.f32 %v130, 0.0
    %v135 = vpack.c.bf16 %v134, %v133
    %v136 = vld [vmem:[#allocation6] sm:$0xf]
    %v137 = vld [vmem:[#allocation6 + $0x4] sm:$0xf]
    %v138 = vld [vmem:[#allocation6 + $0x8] sm:$0xf]
    %v139 = vld [vmem:[#allocation6 + $0xc] sm:$0xf]
    %v140 = vld [vmem:[#allocation6 + $0x10] sm:$0xf]
    %v141 = vld [vmem:[#allocation6 + $0x14] sm:$0xf]
    %v142 = vld [vmem:[#allocation6 + $0x18] sm:$0xf]
    %v143 = vld [vmem:[#allocation6 + $0x1c] sm:$0xf]
    %v144 = vld [vmem:[#allocation6 + $0x20] sm:$0xf]
    %v145 = vld [vmem:[#allocation6 + $0x24] sm:$0xf]
    %v146 = vld [vmem:[#allocation6 + $0x28] sm:$0xf]
    %v147 = vld [vmem:[#allocation6 + $0x2c] sm:$0xf]
    %v148 = vld [vmem:[#allocation6 + $0x30] sm:$0xf]
    %v149 = vld [vmem:[#allocation6 + $0x34] sm:$0xf]
    %v150 = vld [vmem:[#allocation6 + $0x38] sm:$0xf]
    %v151 = vld [vmem:[#allocation6 + $0x3c] sm:$0xf]
    %v152 = vld [vmem:[%s4] sm:$0x1]
    %v154 = vlaneseq
    %v155 = vshrl.u32 %v154, 7
    %v156 = vsub.s32 0, %v155
    %v157 = vrot.slane %v152, %v156
    %v175 = vunpack.c.l.b16 %v136
    %v176 = vunpack.c.l.b16 %v137
    %v177 = vunpack.c.l.b16 %v138
    %v178 = vunpack.c.l.b16 %v139
    %v179 = vunpack.c.l.b16 %v140
    %v180 = vunpack.c.l.b16 %v141
    %v181 = vunpack.c.l.b16 %v142
    %v182 = vunpack.c.l.b16 %v143
    %v183 = vunpack.c.l.b16 %v144
    %v184 = vunpack.c.l.b16 %v145
    %v185 = vunpack.c.l.b16 %v146
    %v186 = vunpack.c.l.b16 %v147
    %v187 = vunpack.c.l.b16 %v148
    %v188 = vunpack.c.l.b16 %v149
    %v189 = vunpack.c.l.b16 %v150
    %v190 = vunpack.c.l.b16 %v151
    %v191 = vpack.c.b16 %v176, %v175
    %v192 = vpack.c.b16 %v178, %v177
    %v193 = vpack.c.b16 %v180, %v179
    %v194 = vpack.c.b16 %v182, %v181
    %v195 = vpack.c.b16 %v184, %v183
    %v196 = vpack.c.b16 %v186, %v185
    %v197 = vpack.c.b16 %v188, %v187
    %v198 = vpack.c.b16 %v190, %v189
    %207 = vmatprep.subr.bf16.mxu0 0
    %208 = vmatpush1.bf16.msra.mxu0 %v198
    %209 = vmatprep.subr.bf16.mxu0 0
    %210 = vmatpush1.bf16.msra.mxu0 %v197
    %211 = vmatprep.subr.bf16.mxu0 0
    %212 = vmatpush1.bf16.msra.mxu0 %v196
    %213 = vmatprep.subr.bf16.mxu0 0
    %214 = vmatpush1.bf16.msra.mxu0 %v195
    %215 = vmatprep.subr.bf16.mxu0 0
    %216 = vmatpush1.bf16.msra.mxu0 %v194
    %217 = vmatprep.subr.bf16.mxu0 0
    %218 = vmatpush1.bf16.msra.mxu0 %v193
    %219 = vmatprep.subr.bf16.mxu0 0
    %220 = vmatpush1.bf16.msra.mxu0 %v192
    %221 = vmatprep.subr.bf16.mxu0 0
    %222 = vmatpush1.bf16.msra.mxu0 %v191
    %223 = vmatprep.subr.bf16.mxu0 0
    %224 = vmatpush2.bf16.msra.mxu0 0
    %225 = vmatprep.subr.bf16.mxu0 0
    %226 = vmatpush2.bf16.msra.mxu0 0
    %227 = vmatprep.subr.bf16.mxu0 0
    %228 = vmatpush2.bf16.msra.mxu0 0
    %229 = vmatprep.subr.bf16.mxu0 0
    %230 = vmatpush2.bf16.msra.mxu0 0
    %231 = vmatprep.subr.bf16.mxu0 0
    %232 = vmatpush2.bf16.msra.mxu0 0
    %233 = vmatprep.subr.bf16.mxu0 0
    %234 = vmatpush2.bf16.msra.mxu0 0
    %235 = vmatprep.subr.bf16.mxu0 0
    %236 = vmatpush2.bf16.msra.mxu0 0
    %237 = vmatprep.subr.bf16.mxu0 0
    %238 = vmatpush2.bf16.msra.mxu0 0
    %239 = vmatprep.mubr.bf16.mxu0 0
    %240 = vmatmul.mubr.bf16.gmra.mxu0 %v135
    %v241 = vpop.f32.mrf.mxu0
    %v242 = vadd.f32 %v157, %v241
    %v243 = vpop.f32.mrf.mxu0
    %v244 = vpop.f32.mrf.mxu0
    %v245 = vadd.f32 %v157, %v244
    %v246 = vpop.f32.mrf.mxu0
    %247 = vdwg.mxu0
    %v248 = vpack.c.bf16 %v245, %v242
    %v250 = vunpack.c.l.b16 %v248
    %v251 = vunpack.c.h.b16 %v248
    %v252 = vpack.c.b16 %v250, %v250
    %v253 = vpack.c.b16 %v251, %v251
    %256 = vst [vmem:[%s5] sm:$0xf] %v252
    %257 = vst [vmem:[%s5 + $0x4] sm:$0xf] %v253
    // Predicated region
    $region34: #{tumor_classifier_forward.1} parent=1 // pred_check
      _
    $region35: #{tumor_classifier_forward.1} parent=1 // pred_check_branch
      %259 = sbr.rel (0) target = $region37
    $region36: #{tumor_classifier_forward.1} parent=1 // pred_region
      _
    $region37: #{tumor_classifier_forward.1} parent=1 // pred_fallthru
      _
    // Predicated region
    $region38: #{tumor_classifier_forward.1} parent=1 // pred_check
      _
    $region39: #{tumor_classifier_forward.1} parent=1 // pred_check_branch
      %261 = sbr.rel (0) target = $region41
    $region40: #{tumor_classifier_forward.1} parent=1 // pred_region
      _
    $region41: #{tumor_classifier_forward.1} parent=1 // pred_fallthru
      _
    %262 = vsyncpa [#allocation3], 1
    %263 = vsyncpa [#allocation5], 1

</llo_original>
